<compile_context>
chip_gen: v7x
topology: tpu7x:2x2x1
jax: 0.10.0
libtpu: 0.0.40
codegen_flags: <defaults>
</compile_context>

<pallas_src>
import functools

import jax
import jax.numpy as jnp
from jax.experimental import pallas as pl
from jax.experimental.pallas import tpu as pltpu


_LIP_SCALE = 1.0 / 1.1


# --------------------------------------------------------------------------- #
# Kernel
# --------------------------------------------------------------------------- #
def _swish_kernel(x_ref, o_ref, *, lipswish: bool, compute_dtype):
    x = x_ref[...]
    xc = x.astype(compute_dtype)
    if compute_dtype == jnp.bfloat16:
        # EUP-friendly sigmoid: sigmoid(x) == 0.5*(tanh(x/2)+1) exactly.
        # Keeps the bf16 fast path off any VPU divide / Newton iteration.
        half = jnp.asarray(0.5, compute_dtype)
        sig = half * (jnp.tanh(half * xc) + jnp.asarray(1.0, compute_dtype))
    else:
        sig = jax.nn.sigmoid(xc)
    out = xc * sig
    if lipswish:
        out = out * jnp.asarray(_LIP_SCALE, compute_dtype)  # folded mul, no divide
    o_ref[...] = out.astype(o_ref.dtype)


# --------------------------------------------------------------------------- #
# Wrapper helpers
# --------------------------------------------------------------------------- #
@functools.lru_cache(maxsize=1)
def _chip_generation() -> int:
    """Best-effort TPU generation (5, 6, 7, ...). Falls back to 6 if unknown."""
    kind = ""
    try:
        kind = jax.devices()[0].device_kind.lower()
    except Exception:  # pragma: no cover
        pass
    if "7x" in kind or "v7" in kind:
        return 7
    for gen in (6, 5, 4, 3, 2):
        if f"v{gen}" in kind:
            return gen
    return 6


def _pick_layout(n: int):
    """Lane-dense (rows, cols) layout for a flat, 128-aligned element count."""
    candidates = (8192, 4096, 2048, 1024, 512, 256, 128)
    for c in candidates:                       # prefer wide lanes AND >=8 rows
        if n % c == 0 and (n // c) >= 8:
            return n // c, c
    for c in candidates:                       # tiny inputs: widest that divides
        if n % c == 0:
            return n // c, c
    return n // 128, 128                       # unreachable when n % 128 == 0


def _pick_block_rows(rows: int, cols: int, itemsize: int, *, row_multiple: int,
                     target_block_bytes: int, min_grid_steps: int) -> int:
    """Block row count: multiple of the sublane packing, byte-budget capped."""
    if rows <= row_multiple:
        return rows                            # single full-extent block (legal)
    # Largest block that fits the per-block byte budget.
    cap = max(row_multiple,
              (target_block_bytes // (cols * itemsize)) // row_multiple * row_multiple)
    # Aim for >= min_grid_steps grid steps when the row count allows it.
    want = max(row_multiple,
               (pl.cdiv(rows, min_grid_steps) // row_multiple) * row_multiple)
    full = max(row_multiple, (rows // row_multiple) * row_multiple)
    return min(cap, want, full)


def _swish_jnp(x, lipswish: bool):
    out = x * jax.nn.sigmoid(x)
    if lipswish:
        out = out * jnp.asarray(_LIP_SCALE, out.dtype)
    return out


# --------------------------------------------------------------------------- #
# Public entry point
# --------------------------------------------------------------------------- #
def swish(x: jnp.ndarray, lipswish: bool = False) -> jnp.ndarray:
    """Elementwise Swish / LipSwish via Pallas. Accepts any shape (e.g. NCHW)."""
    orig_shape = x.shape
    dtype = x.dtype
    n = x.size
    if n == 0:
        return x

    gen = _chip_generation()
    itemsize = jnp.dtype(dtype).itemsize
    # Sublane packing: f32 -> 8 rows, bf16/f16 -> 16, int8/fp8 -> 32.
    row_multiple = 8 * max(1, 4 // itemsize)
    # bf16 VPU/EUP are native on v6e/v7x only; v5e and older compute in f32.
    if dtype == jnp.bfloat16 and gen >= 6:
        compute_dtype = jnp.bfloat16
    else:
        compute_dtype = jnp.float32

    n_tail = n % 128
    n_main = n - n_tail

    if n_main == 0:
        # Fewer than 128 elements: launch overhead dominates; plain XLA fuses
        # this into a single mem-bound pass anyway.
        return _swish_jnp(x, lipswish)

    x_flat = jnp.reshape(x, (n,))
    x_main = x_flat if n_tail == 0 else x_flat[:n_main]

    rows, cols = _pick_layout(n_main)
    x2d = jnp.reshape(x_main, (rows, cols))    # free metadata reshape

    # Generation-specific tiling targets.
    if gen >= 7:
        target_block_bytes = 4 * 1024 * 1024   # 64 MiB VMEM per TC
        min_grid_steps = 4                     # >=2 steps per TensorCore
    else:
        target_block_bytes = 8 * 1024 * 1024   # 128 MiB VMEM on v5e/v6e
        min_grid_steps = 2

    block_rows = _pick_block_rows(
        rows, cols, itemsize, row_multiple=row_multiple,
        target_block_bytes=target_block_bytes, min_grid_steps=min_grid_steps)
    grid = pl.cdiv(rows, block_rows)           # ragged last block is masked

    block_bytes = block_rows * cols * itemsize
    # Up to 3 input buffers + 2 output buffers + headroom; v5e's 16 MiB scoped
    # default must be raised explicitly.
    vmem_limit = min(max(6 * block_bytes + (2 << 20), 16 << 20), 112 << 20)

    index_map = lambda i: (i, 0)
    out_spec = pl.BlockSpec((block_rows, cols), index_map)
    in_spec = pl.BlockSpec((block_rows, cols), index_map)
    if gen >= 7 and grid >= 3:
        # Deeper input pipeline hides DMA turnaround on the pure-streaming path.
        try:
            in_spec = pl.BlockSpec((block_rows, cols), index_map,
                                   pipeline_mode=pl.Buffered(3))
        except TypeError:
            pass  # older BlockSpec signature: fall back to default double-buffer

    cost = pl.CostEstimate(
        flops=4 * n_main,
        transcendentals=n_main,
        bytes_accessed=2 * n_main * itemsize,
    )

    kernel = functools.partial(_swish_kernel, lipswish=lipswish,
                               compute_dtype=compute_dtype)

    out2d = pl.pallas_call(
        kernel,
        out_shape=jax.ShapeDtypeStruct((rows, cols), dtype),
        grid_spec=pltpu.PrefetchScalarGridSpec(
            num_scalar_prefetch=0,
            grid=(grid,),
            in_specs=[in_spec],
            out_specs=out_spec,
        ),
        compiler_params=pltpu.CompilerParams(
            dimension_semantics=("parallel",),
            vmem_limit_bytes=vmem_limit,
        ),
        cost_estimate=cost,
    )(x2d)

    out_main = jnp.reshape(out2d, (n_main,))
    if n_tail:
        tail = _swish_jnp(x_flat[n_main:], lipswish)
        return jnp.reshape(jnp.concatenate([out_main, tail]), orig_shape)
    return jnp.reshape(out_main, orig_shape)


# --------------------------------------------------------------------------- #
# Self-test
# --------------------------------------------------------------------------- #
def _swish_ref(x, lipswish):
    out = x * jax.nn.sigmoid(x)
    return out / 1.1 if lipswish else out


if __name__ == "__main__":
    key = jax.random.PRNGKey(0)

    # NCHW input, as a conv-style activation input would be.
    x = jax.random.normal(key, (2, 4, 16, 16), dtype=jnp.float32)

    # Plain Swish
    y = jax.block_until_ready(swish(x, lipswish=False))
    assert jnp.allclose(y, _swish_ref(x, False), atol=1e-5, rtol=1e-5), "Swish mismatch"

    # LipSwish variant
    y_lip = jax.block_until_ready(swish(x, lipswish=True))
    assert jnp.allclose(y_lip, _swish_ref(x, True), atol=1e-5, rtol=1e-5), "LipSwish mismatch"

    # Ragged last block path (2176 elems -> rows=17, block_rows=8, grid=3).
    x_r = jax.random.normal(key, (2, 4, 17, 16), dtype=jnp.float32)
    y_r = jax.block_until_ready(swish(x_r, lipswish=True))
    assert jnp.allclose(y_r, _swish_ref(x_r, True), atol=1e-5, rtol=1e-5), "ragged mismatch"

    # Non-multiple-of-128 path (1155 elems): kernel on 1152-elem prefix + jnp tail.
    x_o = jax.random.normal(key, (3, 5, 7, 11), dtype=jnp.float32)
    y_o = jax.block_until_ready(swish(x_o, lipswish=False))
    assert jnp.allclose(y_o, _swish_ref(x_o, False), atol=1e-5, rtol=1e-5), "prefix/tail mismatch"

    # bf16 fast path (bf16 compute on v6e/v7x, f32 compute on v5e).
    x_bf = jax.random.normal(key, (2, 8, 32, 32), dtype=jnp.bfloat16)
    y_bf = jax.block_until_ready(swish(x_bf, lipswish=True))
    ref_bf = _swish_ref(x_bf.astype(jnp.float32), True)
    assert jnp.allclose(y_bf.astype(jnp.float32), ref_bf, atol=3e-2, rtol=5e-2), "bf16 mismatch"

    print("KERNEL_OK")
</pallas_src>

<mosaic_0001>
module attributes {stable_mosaic.version = 11 : i64} {
  func.func @_swish_kernel(%arg0: i32, %arg1: memref<8x256xf32, #tpu.memory_space<vmem>>, %arg2: memref<8x256xf32, #tpu.memory_space<vmem>>) attributes {dimension_semantics = [#tpu.dimension_semantics<parallel>], iteration_bounds = array<i64: 1>, scalar_prefetch = 0 : i64, scratch_operands = 0 : i64, tpu.core_type = #tpu.core_type<tc>, window_params = [{transform_indices = @transform_0, window_bounds = array<i64: 8, 256>}, {transform_indices = @transform_1, window_bounds = array<i64: 8, 256>}]} {
    %c0 = arith.constant 0 : index
    %c0_0 = arith.constant 0 : index
    %0 = vector.load %arg1[%c0, %c0_0] : memref<8x256xf32, #tpu.memory_space<vmem>>, vector<8x256xf32>
    %1 = arith.negf %0 : vector<8x256xf32>
    %2 = math.exp %1 : vector<8x256xf32>
    %cst = arith.constant 1.000000e+00 : f32
    %3 = vector.broadcast %cst : f32 to vector<8x256xf32>
    %4 = arith.addf %3, %2 : vector<8x256xf32>
    %5 = arith.divf %3, %4 : vector<8x256xf32>
    %6 = arith.mulf %0, %5 : vector<8x256xf32>
    %c0_1 = arith.constant 0 : index
    %c0_2 = arith.constant 0 : index
    %7 = vector.load %arg2[%c0_1, %c0_2] : memref<8x256xf32, #tpu.memory_space<vmem>>, vector<8x256xf32>
    tpu.vector_store %arg2[%c0_1, %c0_2], %6 {strides = array<i32>} : memref<8x256xf32, #tpu.memory_space<vmem>>, vector<8x256xf32>,
    return
  }
  func.func @transform_0(%arg0: i32) -> (i32, i32) {
    %c0_i32 = arith.constant 0 : i32
    %c0_i32_0 = arith.constant 0 : i32
    return %arg0, %c0_i32 : i32, i32
  }
  func.func @transform_1(%arg0: i32) -> (i32, i32) {
    %c0_i32 = arith.constant 0 : i32
    %c0_i32_0 = arith.constant 0 : i32
    return %arg0, %c0_i32 : i32, i32
  }
}

</mosaic_0001>

<llo_original>
// kernel: tpu_custom_call.1
$region0: #{tpu_custom_call.1}
  #allocation0 [shape = 'u32[]', space=smem, size = 0x4, offset = 0x4, fixed_abs, tag = 'smem constant byte address 0x4 - core index']
  #allocation1 [shape = 'u32[144,128]{1,0:T(1,128)}', space=vmem, size = 0x12000, scoped, tag = 'internal scratch']
  %s0 = inlined_call_operand.hbm [shape: f32[8,256], index: 0, kind: input, shape index: {}]
  %s1 = inlined_call_operand.hbm [shape: f32[8,256], index: 1, kind: output, shape index: {}]
  %s2 = sld [smem:[#allocation0]]
  $region18: #{tpu_custom_call.1} parent=0
    _
  %s4 = ssub.s32 1, %s2
  %s5 = scalar_select 0, %s4, %s2
  $region1: #{tpu_custom_call.1} parent=0
    #allocation2 [shape = 'u8[8192]{0}', space=vmem, size = 0x2000, scoped, tag = 'input window, operand 0, single buffered']
    #allocation3 [shape = 's32[1]{0}', space=sflag, size = 0x4, scoped, tag = 'scoped memory for tpu_custom_call.1']
    #allocation4 [shape = 's32[1]{0}', space=sflag, size = 0x4, scoped, tag = 'scoped memory for tpu_custom_call.1']
    #allocation5 [shape = 'u8[8192]{0}', space=vmem, size = 0x2000, scoped, tag = 'output window, operand 0, single buffered']
    %6 = vsyncpa [#allocation3], 0
    %7 = vsyncpa [#allocation4], 0
    // Predicated region
    $region2: #{tpu_custom_call.1} parent=1 // pred_check
      _
    $region3: #{tpu_custom_call.1} parent=1 // pred_check_branch
      %9 = sbr.rel (0) target = $region5
    $region4: #{tpu_custom_call.1} parent=1 // pred_region
      %s11 = ssub.s32 256, 256
      %12 = vsyncadd [#allocation3], %s11
      %s14 = sshll.u32 [#allocation2], 4
      %s15 = int_to_ptr.vmem [resolvable:$true] %s14
      %17 = dma.hbm_to_vmem [thread:$0]  %s0, 256, %s15, [#allocation3]
    $region5: #{tpu_custom_call.1} parent=1 // pred_fallthru
      _
    // Predicated region
    $region6: #{tpu_custom_call.1} parent=1 // pred_check
      _
    $region7: #{tpu_custom_call.1} parent=1 // pred_check_branch
      %19 = sbr.rel (0) target = $region9
    $region8: #{tpu_custom_call.1} parent=1 // pred_region
      %20 = dma.done [#allocation3], 256
    $region9: #{tpu_custom_call.1} parent=1 // pred_fallthru
      _
    %v21 = vld [vmem:[#allocation2] sm:$0xff]
    %v22 = vld [vmem:[#allocation2 + $0x8] sm:$0xff]
    %v23 = vxor.u32 %v21, 2147483648
    %v24 = vxor.u32 %v22, 2147483648
    %v25 = vmul.f32 %v23, 1.442695
    %v26 = vpow.pop %v25
    %v27 = vmul.f32 %v24, 1.442695
    %v28 = vpow.pop %v27
    %v29 = vadd.f32 %v26, 1.0
    %v30 = vadd.f32 %v28, 1.0
    %v31 = vrcp.pop %v29
    %v32 = vmul.f32 1.0, %v31
    %v33 = vrcp.pop %v30
    %v34 = vmul.f32 1.0, %v33
    %v35 = vmul.f32 %v21, %v32
    %v36 = vmul.f32 %v22, %v34
    %37 = vst [vmem:[#allocation5] sm:$0xff] %v35
    %38 = vst [vmem:[#allocation5 + $0x8] sm:$0xff] %v36
    // Predicated region
    $region10: #{tpu_custom_call.1} parent=1 // pred_check
      _
    $region11: #{tpu_custom_call.1} parent=1 // pred_check_branch
      %40 = sbr.rel (0) target = $region13
    $region12: #{tpu_custom_call.1} parent=1 // pred_region
      %s42 = ssub.s32 256, 256
      %43 = vsyncadd [#allocation4], %s42
      %s45 = sshll.u32 [#allocation5], 4
      %s46 = int_to_ptr.vmem [resolvable:$true] %s45
      %48 = dma.vmem_to_hbm [thread:$0]  %s46, 256, %s1, [#allocation4]
    $region13: #{tpu_custom_call.1} parent=1 // pred_fallthru
      _
    // Predicated region
    $region14: #{tpu_custom_call.1} parent=1 // pred_check
      _
    $region15: #{tpu_custom_call.1} parent=1 // pred_check_branch
      %50 = sbr.rel (0) target = $region17
    $region16: #{tpu_custom_call.1} parent=1 // pred_region
      %51 = dma.done [#allocation4], 256
    $region17: #{tpu_custom_call.1} parent=1 // pred_fallthru
      _
    %52 = vsyncpa [#allocation3], 1
    %53 = vsyncpa [#allocation4], 1

</llo_original>
